<compile_context>
chip_gen: v7x
topology: tpu7x:2x2x1
jax: 0.10.0
libtpu: 0.0.40
codegen_flags: <defaults>
</compile_context>

<pallas_src>
import functools

import jax
import jax.numpy as jnp
from jax.experimental import pallas as pl
from jax.experimental.pallas import tpu as pltpu


def layer_att_kernel(gamma_ref, x_ref, o_ref, *, n_layers, n_groups):
    """x_ref / o_ref: (R, M) slab block with R = n_groups * n_layers rows.

    Each consecutive group of `n_layers` rows is one batch element; attention
    mixes rows only within a group (block-diagonal mask).
    """
    x = x_ref[...].astype(jnp.float32)                      # (R, M)
    rows = n_groups * n_layers

    # Block-diagonal "same batch" mask, built from iota + compares only
    # (no integer division), statically unrolled over the small group count.
    ri = jax.lax.broadcasted_iota(jnp.int32, (rows, rows), 0)
    ci = jax.lax.broadcasted_iota(jnp.int32, (rows, rows), 1)

    def group_mask(g):
        lo = g * n_layers
        hi = lo + n_layers
        return (ri >= lo) & (ri < hi) & (ci >= lo) & (ci < hi)

    same = group_mask(0)
    for g in range(1, n_groups):
        same = same | group_mask(g)

    # Gram matrix over the lane (M) dim: G = X @ X^T — one 2-D MXU dot.
    gram = jax.lax.dot_general(x, x, (((1,), (1,)), ((), ())),
                               preferred_element_type=jnp.float32)   # (R, R)

    # energy_new = rowmax(G) - G within each batch block; masked softmax.
    neg = jnp.float32(-1e30)
    gram_in = jnp.where(same, gram, neg)
    row_max = jnp.max(gram_in, axis=-1, keepdims=True)
    energy_new = jnp.where(same, row_max - gram, neg)
    stab = jnp.max(energy_new, axis=-1, keepdims=True)
    e = jnp.exp(energy_new - stab)                           # off-block -> 0
    attn = e / jnp.sum(e, axis=-1, keepdims=True)            # (R, R) blockdiag

    # out = attention @ V as a single 2-D dot (zeros off-block keep batches
    # independent), then gamma-scaled residual add.
    out = jax.lax.dot_general(attn, x, (((1,), (0,)), ((), ())),
                              preferred_element_type=jnp.float32)    # (R, M)

    gamma = gamma_ref[0]
    o_ref[...] = (gamma * out + x).astype(o_ref.dtype)


def _pick_batches_per_block(B, N, M, itemsize, target_block_bytes,
                            min_block_bytes):
    """Batches per block Bt: Bt*N a multiple of 8 (or the full B), block fits
    the VMEM budget, and the grid keeps several steps for pipelining."""
    legal = [d for d in range(1, B + 1)
             if B % d == 0 and ((d * N) % 8 == 0 or d == B)]
    aligned = [d for d in legal if (d * N) % 8 == 0] or legal
    fits = ([d for d in aligned if d * N * M * itemsize <= target_block_bytes]
            or [min(aligned)])
    big = sorted(d for d in fits if d * N * M * itemsize >= min_block_bytes)
    if big:
        return big[0]            # smallest block that is still "big enough"
    for d in sorted(fits):       # tiny problem: keep a handful of grid steps
        if B // d <= 8:
            return d
    return max(fits)


def layer_att(x, gamma, *, target_block_bytes=None, min_block_bytes=1 << 20):
    """x: (B, N, C, H, W), gamma: (1,) -> (B, N*C, H, W)."""
    B, N, C, H, W = x.shape
    M = C * H * W
    x2 = x.reshape(B * N, M)                 # lane-dense 2-D slab
    itemsize = jnp.dtype(x.dtype).itemsize

    # Generation-aware VMEM budget (v5e/v6e 128 MiB phys, v7x 64 MiB).
    try:
        phys_vmem = int(pltpu.get_tpu_info().vmem_capacity_bytes)
    except Exception:
        phys_vmem = 64 << 20
    vmem_cap = (phys_vmem * 3) // 4
    if target_block_bytes is None:
        # ~2 in + 2 out pipeline buffers + f32 temporaries inside the kernel.
        target_block_bytes = max(1 << 20, vmem_cap // 8)

    Bt = _pick_batches_per_block(B, N, M, itemsize, target_block_bytes,
                                 min_block_bytes)
    R = Bt * N
    grid_len = B // Bt
    block_bytes = R * M * itemsize
    vmem_limit = int(min(vmem_cap, max(32 << 20, 10 * block_bytes)))

    cost = pl.CostEstimate(
        flops=int(4 * (B * N) * R * M),
        transcendentals=int((B * N) * R),
        bytes_accessed=int(2 * (B * N) * M * itemsize),
    )

    kernel = functools.partial(layer_att_kernel, n_layers=N, n_groups=Bt)
    out2 = pl.pallas_call(
        kernel,
        out_shape=jax.ShapeDtypeStruct((B * N, M), x.dtype),
        grid=(grid_len,),
        in_specs=[
            pl.BlockSpec(memory_space=pltpu.SMEM),          # gamma scalar
            pl.BlockSpec((R, M), lambda g: (g, 0)),         # x slab block
        ],
        out_specs=pl.BlockSpec((R, M), lambda g: (g, 0)),
        compiler_params=pltpu.CompilerParams(
            dimension_semantics=("parallel",),
            vmem_limit_bytes=vmem_limit),
        cost_estimate=cost,
    )(gamma, x2)

    return out2.reshape(B, N * C, H, W)


def layer_att_ref(x, gamma):
    """Pure-JAX f32 reference mirroring the PyTorch forward (HIGHEST precision
    so the reference matmuls are true f32, like the kernel)."""
    B, N, C, H, W = x.shape
    q = x.reshape(B, N, -1).astype(jnp.float32)
    energy = jnp.einsum('bnm,bkm->bnk', q, q,
                        precision=jax.lax.Precision.HIGHEST)
    energy_new = jnp.max(energy, axis=-1, keepdims=True) - energy
    attention = jax.nn.softmax(energy_new, axis=-1)
    out = jnp.einsum('bnk,bkm->bnm', attention, q,
                     precision=jax.lax.Precision.HIGHEST)
    out = gamma[0] * out + q
    return out.reshape(B, N * C, H, W).astype(x.dtype)


if __name__ == "__main__":
    key = jax.random.PRNGKey(0)
    kx, kg, kx2 = jax.random.split(key, 3)

    layer_att_jit = jax.jit(layer_att)

    # Case 1: B*N = 8 rows -> single full-slab block (grid length 1).
    B, N, C, H, W = 2, 4, 4, 8, 8
    x = jax.random.normal(kx, (B, N, C, H, W), dtype=jnp.float32)
    gamma = jax.random.normal(kg, (1,), dtype=jnp.float32)   # Parameter(randn(1))

    out = jax.block_until_ready(layer_att_jit(x, gamma))
    ref = layer_att_ref(x, gamma)
    assert out.shape == (B, N * C, H, W)
    err1 = float(jnp.max(jnp.abs(out - ref)))
    assert jnp.allclose(out, ref, atol=1e-2, rtol=1e-2), \
        f"mismatch vs reference (case 1), max_abs_err={err1}"

    # Case 2: more batches -> 8-row blocks, multi-step grid (pipelined path).
    B2 = 8
    x2 = jax.random.normal(kx2, (B2, N, C, H, W), dtype=jnp.float32)
    out2 = jax.block_until_ready(layer_att_jit(x2, gamma))
    ref2 = layer_att_ref(x2, gamma)
    assert out2.shape == (B2, N * C, H, W)
    err2 = float(jnp.max(jnp.abs(out2 - ref2)))
    assert jnp.allclose(out2, ref2, atol=1e-2, rtol=1e-2), \
        f"mismatch vs reference (case 2), max_abs_err={err2}"

    print("KERNEL_OK")
</pallas_src>

<mosaic_0001>
module attributes {stable_mosaic.version = 11 : i64} {
  func.func @layer_att_kernel(%arg0: i32, %arg1: memref<1xf32, #tpu.memory_space<smem>>, %arg2: memref<8x256xf32, #tpu.memory_space<vmem>>, %arg3: memref<8x256xf32, #tpu.memory_space<vmem>>) attributes {dimension_semantics = [#tpu.dimension_semantics<parallel>], iteration_bounds = array<i64: 1>, scalar_prefetch = 0 : i64, scratch_operands = 0 : i64, tpu.core_type = #tpu.core_type<tc>, window_params = [{transform_indices = @transform_0, window_bounds = array<i64: 1>}, {transform_indices = @transform_1, window_bounds = array<i64: 8, 256>}, {transform_indices = @transform_2, window_bounds = array<i64: 8, 256>}]} {
    %c0 = arith.constant 0 : index
    %c0_0 = arith.constant 0 : index
    %0 = vector.load %arg2[%c0, %c0_0] : memref<8x256xf32, #tpu.memory_space<vmem>>, vector<8x256xf32>
    %1 = tpu.iota {dimensions = array<i32: 0>} : vector<8x8xi32>
    %2 = tpu.iota {dimensions = array<i32: 1>} : vector<8x8xi32>
    %c0_i32 = arith.constant 0 : i32
    %3 = vector.broadcast %c0_i32 : i32 to vector<8x8xi32>
    %4 = arith.cmpi sge, %1, %3 : vector<8x8xi32>
    %c4_i32 = arith.constant 4 : i32
    %5 = vector.broadcast %c4_i32 : i32 to vector<8x8xi32>
    %6 = arith.cmpi slt, %1, %5 : vector<8x8xi32>
    %7 = arith.andi %4, %6 : vector<8x8xi1>
    %c0_i32_1 = arith.constant 0 : i32
    %8 = vector.broadcast %c0_i32_1 : i32 to vector<8x8xi32>
    %9 = arith.cmpi sge, %2, %8 : vector<8x8xi32>
    %10 = arith.andi %7, %9 : vector<8x8xi1>
    %c4_i32_2 = arith.constant 4 : i32
    %11 = vector.broadcast %c4_i32_2 : i32 to vector<8x8xi32>
    %12 = arith.cmpi slt, %2, %11 : vector<8x8xi32>
    %13 = arith.andi %10, %12 : vector<8x8xi1>
    %c4_i32_3 = arith.constant 4 : i32
    %14 = vector.broadcast %c4_i32_3 : i32 to vector<8x8xi32>
    %15 = arith.cmpi sge, %1, %14 : vector<8x8xi32>
    %c8_i32 = arith.constant 8 : i32
    %16 = vector.broadcast %c8_i32 : i32 to vector<8x8xi32>
    %17 = arith.cmpi slt, %1, %16 : vector<8x8xi32>
    %18 = arith.andi %15, %17 : vector<8x8xi1>
    %c4_i32_4 = arith.constant 4 : i32
    %19 = vector.broadcast %c4_i32_4 : i32 to vector<8x8xi32>
    %20 = arith.cmpi sge, %2, %19 : vector<8x8xi32>
    %21 = arith.andi %18, %20 : vector<8x8xi1>
    %c8_i32_5 = arith.constant 8 : i32
    %22 = vector.broadcast %c8_i32_5 : i32 to vector<8x8xi32>
    %23 = arith.cmpi slt, %2, %22 : vector<8x8xi32>
    %24 = arith.andi %21, %23 : vector<8x8xi1>
    %25 = arith.ori %13, %24 : vector<8x8xi1>
    %cst = arith.constant dense<0.000000e+00> : vector<8x8xf32>
    %26 = tpu.matmul %0, %0, %cst {dimension_numbers = #tpu.dot_dimension_numbers<[1], [1], [0], [0], [0, 0, 1, 0], [], []>} : vector<8x256xf32>, vector<8x256xf32>, vector<8x8xf32> -> vector<8x8xf32>
    %cst_6 = arith.constant -1.000000e+30 : f32
    %27 = vector.broadcast %cst_6 : f32 to vector<8x8xf32>
    %28 = arith.select %25, %26, %27 : vector<8x8xi1>, vector<8x8xf32>
    %cst_7 = arith.constant dense<0xFF800000> : vector<8xf32>
    %29 = vector.multi_reduction <maximumf>, %28, %cst_7 [1] : vector<8x8xf32> to vector<8xf32>
    %30 = vector.shape_cast %29 : vector<8xf32> to vector<8x1xf32>
    %31 = vector.broadcast %30 : vector<8x1xf32> to vector<8x8xf32>
    %32 = arith.subf %31, %26 : vector<8x8xf32>
    %cst_8 = arith.constant -1.000000e+30 : f32
    %33 = vector.broadcast %cst_8 : f32 to vector<8x8xf32>
    %34 = arith.select %25, %32, %33 : vector<8x8xi1>, vector<8x8xf32>
    %cst_9 = arith.constant dense<0xFF800000> : vector<8xf32>
    %35 = vector.multi_reduction <maximumf>, %34, %cst_9 [1] : vector<8x8xf32> to vector<8xf32>
    %36 = vector.shape_cast %35 : vector<8xf32> to vector<8x1xf32>
    %37 = vector.broadcast %36 : vector<8x1xf32> to vector<8x8xf32>
    %38 = arith.subf %34, %37 : vector<8x8xf32>
    %39 = math.exp %38 : vector<8x8xf32>
    %cst_10 = arith.constant dense<0.000000e+00> : vector<8xf32>
    %40 = vector.multi_reduction <add>, %39, %cst_10 [1] : vector<8x8xf32> to vector<8xf32>
    %41 = vector.shape_cast %40 : vector<8xf32> to vector<8x1xf32>
    %42 = vector.broadcast %41 : vector<8x1xf32> to vector<8x8xf32>
    %43 = arith.divf %39, %42 : vector<8x8xf32>
    %cst_11 = arith.constant dense<0.000000e+00> : vector<8x256xf32>
    %44 = tpu.matmul %43, %0, %cst_11 {dimension_numbers = #tpu.dot_dimension_numbers<[1], [0], [0], [1], [0, 0, 1, 1], [], []>} : vector<8x8xf32>, vector<8x256xf32>, vector<8x256xf32> -> vector<8x256xf32>
    %c0_12 = arith.constant 0 : index
    %45 = memref.load %arg1[%c0_12] : memref<1xf32, #tpu.memory_space<smem>>
    %46 = vector.broadcast %45 : f32 to vector<8x256xf32>
    %47 = arith.mulf %46, %44 : vector<8x256xf32>
    %48 = arith.addf %47, %0 : vector<8x256xf32>
    %c0_13 = arith.constant 0 : index
    %c0_14 = arith.constant 0 : index
    %49 = vector.load %arg3[%c0_13, %c0_14] : memref<8x256xf32, #tpu.memory_space<vmem>>, vector<8x256xf32>
    tpu.vector_store %arg3[%c0_13, %c0_14], %48 {strides = array<i32>} : memref<8x256xf32, #tpu.memory_space<vmem>>, vector<8x256xf32>,
    return
  }
  func.func @transform_0(%arg0: i32) -> i32 {
    %c0_i32 = arith.constant 0 : i32
    %c0_i32_0 = arith.constant 0 : i32
    return %c0_i32 : i32
  }
  func.func @transform_1(%arg0: i32) -> (i32, i32) {
    %c0_i32 = arith.constant 0 : i32
    %c0_i32_0 = arith.constant 0 : i32
    return %arg0, %c0_i32 : i32, i32
  }
  func.func @transform_2(%arg0: i32) -> (i32, i32) {
    %c0_i32 = arith.constant 0 : i32
    %c0_i32_0 = arith.constant 0 : i32
    return %arg0, %c0_i32 : i32, i32
  }
}

</mosaic_0001>

<llo_original>
// kernel: layer_att.1
$region0: #{layer_att.1}
  #allocation0 [shape = 'u32[]', space=smem, size = 0x4, offset = 0x4, fixed_abs, tag = 'smem constant byte address 0x4 - core index']
  #allocation1 [shape = 'u32[144,128]{1,0:T(1,128)}', space=vmem, size = 0x12000, scoped, tag = 'internal scratch']
  #allocation2 [shape = 'f32[1]{0:T(128)S(6)}', space=smem, size = 0x200, scoped, tag = 'scoped memory for layer_att.1']
  %s0 = inlined_call_operand.<no memory space> [shape: f32[1], index: 0, kind: input, shape index: {}]
  %s1 = inlined_call_operand.vmem [shape: f32[8,256], index: 1, kind: input, shape index: {}]
  %s2 = inlined_call_operand.vmem [shape: f32[8,256], index: 2, kind: output, shape index: {}]
  %s3 = sld [smem:[#allocation0]]
  $region18: #{layer_att.1} parent=0
    _
  %s5 = ssub.s32 1, %s3
  %s6 = scalar_select 0, %s5, %s3
  %7 = sst [smem:[#allocation2]] %s0
  // Predicated region
  $region2: #{layer_att.1} parent=0 // pred_check
    _
  $region3: #{layer_att.1} parent=0 // pred_check_branch
    %9 = sbr.rel (0) target = $region5
  $region4: #{layer_att.1} parent=0 // pred_region
    _
  $region5: #{layer_att.1} parent=0 // pred_fallthru
    _
  // Predicated region
  $region6: #{layer_att.1} parent=0 // pred_check
    _
  $region7: #{layer_att.1} parent=0 // pred_check_branch
    %11 = sbr.rel (0) target = $region9
  $region8: #{layer_att.1} parent=0 // pred_region
    _
  $region9: #{layer_att.1} parent=0 // pred_fallthru
    _
  %v12 = vld [vmem:[%s1] sm:$0xff]
  %v13 = vld [vmem:[%s1 + $0x8] sm:$0xff]
  %v14 = vlaneseq
  %v15 = vshrl.u32 %v14, 7
  %v16 = vlaneseq
  %v17 = vand.u32 %v16, 127
  %vm18 = vcmp.ge.s32.totalorder %v15, 0
  %vm19 = vcmp.lt.s32.totalorder %v15, 4
  %vm20 = vmand %vm18, %vm19
  %vm21 = vcmp.ge.s32.totalorder %v17, 0
  %vm22 = vmand %vm20, %vm21
  %vm23 = vcmp.lt.s32.totalorder %v17, 4
  %vm24 = vmand %vm22, %vm23
  %vm25 = vcmp.ge.s32.totalorder %v15, 4
  %vm26 = vcmp.lt.s32.totalorder %v15, 8
  %vm27 = vmand %vm25, %vm26
  %vm28 = vcmp.ge.s32.totalorder %v17, 4
  %vm29 = vmand %vm27, %vm28
  %vm30 = vcmp.lt.s32.totalorder %v17, 8
  %vm31 = vmand %vm29, %vm30
  %vm32 = vmor %vm24, %vm31
  %33 = vmatprep.subr.mxu0 %v13
  %34 = vmatpush1.xpose.msra.mxu0 %v12
  %35 = vmatprep.subr.mxu0 0.0
  %36 = vmatpush1.xpose.msra.mxu0 0.0
  %37 = vmatprep.subr.mxu0 0.0
  %38 = vmatpush1.xpose.msra.mxu0 0.0
  %39 = vmatprep.subr.mxu0 0.0
  %40 = vmatpush1.xpose.msra.mxu0 0.0
  %41 = vmatprep.subr.mxu0 0.0
  %42 = vmatpush1.xpose.msra.mxu0 0.0
  %43 = vmatprep.subr.mxu0 0.0
  %44 = vmatpush1.xpose.msra.mxu0 0.0
  %45 = vmatprep.subr.mxu0 0.0
  %46 = vmatpush1.xpose.msra.mxu0 0.0
  %47 = vmatprep.subr.mxu0 0.0
  %48 = vmatpush1.xpose.msra.mxu0 0.0
  %49 = vmatprep.subr.mxu0 0.0
  %50 = vmatpush1.xpose.msra.mxu0 0.0
  %51 = vmatprep.subr.mxu0 0.0
  %52 = vmatpush1.xpose.msra.mxu0 0.0
  %53 = vmatprep.subr.mxu0 0.0
  %54 = vmatpush1.xpose.msra.mxu0 0.0
  %55 = vmatprep.subr.mxu0 0.0
  %56 = vmatpush1.xpose.msra.mxu0 0.0
  %57 = vmatprep.subr.mxu0 0.0
  %58 = vmatpush1.xpose.msra.mxu0 0.0
  %59 = vmatprep.subr.mxu0 0.0
  %60 = vmatpush1.xpose.msra.mxu0 0.0
  %61 = vmatprep.subr.mxu0 0.0
  %62 = vmatpush1.xpose.msra.mxu0 0.0
  %63 = vmatprep.subr.mxu0 0.0
  %64 = vmatpush1.xpose.msra.mxu0 0.0
  %65 = vmatprep.subr.mxu0 0.0
  %66 = vmatpush1.xpose.msra.mxu0 0.0
  %67 = vmatprep.subr.mxu0 0.0
  %68 = vmatpush1.xpose.msra.mxu0 0.0
  %69 = vmatprep.subr.mxu0 0.0
  %70 = vmatpush1.xpose.msra.mxu0 0.0
  %71 = vmatprep.subr.mxu0 0.0
  %72 = vmatpush1.xpose.msra.mxu0 0.0
  %73 = vmatprep.subr.mxu0 0.0
  %74 = vmatpush1.xpose.msra.mxu0 0.0
  %75 = vmatprep.subr.mxu0 0.0
  %76 = vmatpush1.xpose.msra.mxu0 0.0
  %77 = vmatprep.subr.mxu0 0.0
  %78 = vmatpush1.xpose.msra.mxu0 0.0
  %79 = vmatprep.subr.mxu0 0.0
  %80 = vmatpush1.xpose.msra.mxu0 0.0
  %81 = vmatprep.subr.mxu0 0.0
  %82 = vmatpush1.xpose.msra.mxu0 0.0
  %83 = vmatprep.subr.mxu0 0.0
  %84 = vmatpush1.xpose.msra.mxu0 0.0
  %85 = vmatprep.subr.mxu0 0.0
  %86 = vmatpush1.xpose.msra.mxu0 0.0
  %87 = vmatprep.subr.mxu0 0.0
  %88 = vmatpush1.xpose.msra.mxu0 0.0
  %89 = vmatprep.subr.mxu0 0.0
  %90 = vmatpush1.xpose.msra.mxu0 0.0
  %91 = vmatprep.subr.mxu0 0.0
  %92 = vmatpush1.xpose.msra.mxu0 0.0
  %93 = vmatprep.subr.mxu0 0.0
  %94 = vmatpush1.xpose.msra.mxu0 0.0
  %95 = vmatprep.subr.mxu0 0.0
  %96 = vmatpush1.xpose.msra.mxu0 0.0
  %97 = vmatprep.mubr.f32.mxu0 %v13
  %98 = vmatmul.mubr.f32.gmra.mrb[0].mxu0 %v12
  %v99 = vpop.f32.mrb[0].mxu0
  %v100 = vadd.f32 0.0, %v99
  %v101 = vpop.f32.mrb[0].mxu0
  %102 = vdwg.mxu0
  %v103 = vsel %vm32, %v100, -1e+30
  %vm104 = vcmask 64512
  %v105 = vsel %vm104, %v103, -inf
  %106 = vmax.xlane.f32.xlu0 %v105
  %v107 = vpop.xlane.xlu0 %106
  %v108 = vsub.f32 %v107, %v100
  %v109 = vsel %vm32, %v108, -1e+30
  %v110 = vsel %vm104, %v109, -inf
  %111 = vmax.xlane.f32.xlu0 %v110
  %v112 = vpop.xlane.xlu0 %111
  %v113 = vsub.f32 %v109, %v112
  %v114 = vmul.f32 %v113, 1.442695
  %v115 = vpow.pop %v114
  %v116 = vsel %vm104, %v115, 0.0
  %117 = vadd.xlane.f32.xlu0 %v116
  %v118 = vpop.xlane.xlu0 %117
  %v119 = vrcp.pop %v118
  %v120 = vmul.f32 %v115, %v119
  %v122 = vsel %vm104, %v120, 0
  %124 = vmatprep.subr.mxu0 %v13
  %125 = vmatpush1.msra.mxu0 %v12
  %126 = vmatprep.subr.mxu0 0.0
  %127 = vmatpush1.msra.mxu0 0.0
  %128 = vmatprep.subr.mxu0 0.0
  %129 = vmatpush1.msra.mxu0 0.0
  %130 = vmatprep.subr.mxu0 0.0
  %131 = vmatpush1.msra.mxu0 0.0
  %132 = vmatprep.subr.mxu0 0.0
  %133 = vmatpush1.msra.mxu0 0.0
  %134 = vmatprep.subr.mxu0 0.0
  %135 = vmatpush1.msra.mxu0 0.0
  %136 = vmatprep.subr.mxu0 0.0
  %137 = vmatpush1.msra.mxu0 0.0
  %138 = vmatprep.subr.mxu0 0.0
  %139 = vmatpush1.msra.mxu0 0.0
  %140 = vmatprep.subr.mxu0 0.0
  %141 = vmatpush1.msra.mxu0 0.0
  %142 = vmatprep.subr.mxu0 0.0
  %143 = vmatpush1.msra.mxu0 0.0
  %144 = vmatprep.subr.mxu0 0.0
  %145 = vmatpush1.msra.mxu0 0.0
  %146 = vmatprep.subr.mxu0 0.0
  %147 = vmatpush1.msra.mxu0 0.0
  %148 = vmatprep.subr.mxu0 0.0
  %149 = vmatpush1.msra.mxu0 0.0
  %150 = vmatprep.subr.mxu0 0.0
  %151 = vmatpush1.msra.mxu0 0.0
  %152 = vmatprep.subr.mxu0 0.0
  %153 = vmatpush1.msra.mxu0 0.0
  %154 = vmatprep.subr.mxu0 0.0
  %155 = vmatpush1.msra.mxu0 0.0
  %156 = vmatprep.subr.mxu0 0.0
  %157 = vmatpush1.msra.mxu0 0.0
  %158 = vmatprep.subr.mxu0 0.0
  %159 = vmatpush1.msra.mxu0 0.0
  %160 = vmatprep.subr.mxu0 0.0
  %161 = vmatpush1.msra.mxu0 0.0
  %162 = vmatprep.subr.mxu0 0.0
  %163 = vmatpush1.msra.mxu0 0.0
  %164 = vmatprep.subr.mxu0 0.0
  %165 = vmatpush1.msra.mxu0 0.0
  %166 = vmatprep.subr.mxu0 0.0
  %167 = vmatpush1.msra.mxu0 0.0
  %168 = vmatprep.subr.mxu0 0.0
  %169 = vmatpush1.msra.mxu0 0.0
  %170 = vmatprep.subr.mxu0 0.0
  %171 = vmatpush1.msra.mxu0 0.0
  %172 = vmatprep.subr.mxu0 0.0
  %173 = vmatpush1.msra.mxu0 0.0
  %174 = vmatprep.subr.mxu0 0.0
  %175 = vmatpush1.msra.mxu0 0.0
  %176 = vmatprep.subr.mxu0 0.0
  %177 = vmatpush1.msra.mxu0 0.0
  %178 = vmatprep.subr.mxu0 0.0
  %179 = vmatpush1.msra.mxu0 0.0
  %180 = vmatprep.subr.mxu0 0.0
  %181 = vmatpush1.msra.mxu0 0.0
  %182 = vmatprep.subr.mxu0 0.0
  %183 = vmatpush1.msra.mxu0 0.0
  %184 = vmatprep.subr.mxu0 0.0
  %185 = vmatpush1.msra.mxu0 0.0
  %186 = vmatprep.subr.mxu0 0.0
  %187 = vmatpush1.msra.mxu0 0.0
  %188 = vmatprep.mubr.f32.mxu0 0.0
  %189 = vmatmul.mubr.f32.gmra.mrb[0].mxu0 %v122
  %v190 = vpop.f32.mrb[0].mxu0
  %v191 = vadd.f32 0.0, %v190
  %v192 = vpop.f32.mrb[0].mxu0
  %v193 = vadd.f32 0.0, %v192
  %194 = vdwg.mxu0
  %s195 = sld [smem:[#allocation2]]
  %v196 = vstv %s195
  %v197 = vmul.f32 %v196, %v191
  %v198 = vmul.f32 %v196, %v193
  %v199 = vadd.f32 %v197, %v12
  %v200 = vadd.f32 %v198, %v13
  %201 = vst [vmem:[%s2] sm:$0xff] %v199
  %202 = vst [vmem:[%s2 + $0x8] sm:$0xff] %v200
  // Predicated region
  $region10: #{layer_att.1} parent=0 // pred_check
    _
  $region11: #{layer_att.1} parent=0 // pred_check_branch
    %204 = sbr.rel (0) target = $region13
  $region12: #{layer_att.1} parent=0 // pred_region
    _
  $region13: #{layer_att.1} parent=0 // pred_fallthru
    _
  // Predicated region
  $region14: #{layer_att.1} parent=0 // pred_check
    _
  $region15: #{layer_att.1} parent=0 // pred_check_branch
    %206 = sbr.rel (0) target = $region17
  $region16: #{layer_att.1} parent=0 // pred_region
    _
  $region17: #{layer_att.1} parent=0 // pred_fallthru
    _

</llo_original>
